<compile_context>
chip_gen: v6e
topology: v6e:2x2x1
jax: 0.10.0
libtpu: 0.0.40
codegen_flags: <defaults>
</compile_context>

<pallas_src>
import functools

import jax
import jax.numpy as jnp
from jax.experimental import pallas as pl
from jax.experimental.pallas import tpu as pltpu


def _dila_conv_block_kernel(w_ref, b_ref, x_ref, o_ref, *, n_stages, n_ch):
    """One (batch, spatial-tile) block.

    w_ref: (n_stages, C) f32 in SMEM  -- 1x1x1 conv weight per stage
    b_ref: (n_stages,)   f32 in SMEM  -- conv bias per stage
    x_ref: (1, C, TR, 128)            -- input tile (spatial on sublane/lane)
    o_ref: (1, C, TR, 128)            -- output tile
    """
    # Keep channels as a list of fully packed (TR, 128) 2-D tiles.
    xs = [x_ref[0, c].astype(jnp.float32) for c in range(n_ch)]

    for s in range(n_stages):                      # n_stages is small: static unroll
        # SpatialAttention: 1x1x1 conv C -> 1 (+bias).  Channel reduction is
        # n_ch-1 elementwise VPU adds on packed vregs; weights are SMEM scalars.
        att = xs[0] * w_ref[s, 0] + b_ref[s]
        for c in range(1, n_ch):
            att = att + xs[c] * w_ref[s, c]
        # sigmoid(z) = 0.5 * (tanh(z/2) + 1): single EUP op, no VALU divide.
        att = 0.5 * (jnp.tanh(0.5 * att) + 1.0)    # (TR, 128)
        # normalization == 'none' -> nothing.  Fused gate-multiply + ReLU.
        xs = [jnp.maximum(xc * att, 0.0) for xc in xs]

    for c in range(n_ch):
        o_ref[0, c] = xs[c].astype(o_ref.dtype)


def dila_conv_block(x, weights, biases, *, tile_rows=256):
    """x: (N, C, D, H, W).  weights: (n_stages, C).  biases: (n_stages,)."""
    N, C, D, H, W = x.shape
    n_stages = weights.shape[0]
    assert tile_rows % 8 == 0, "tile_rows must be a multiple of 8 (sublanes)"

    S = D * H * W
    rows = pl.cdiv(S, 128)                 # number of 128-lane rows of the volume
    if rows <= tile_rows:
        tr = rows                          # single spatial tile: block == full dim
        rows_pad = rows
    else:
        tr = tile_rows                     # multiple of 8 -> valid sublane tiling
        rows_pad = pl.cdiv(rows, tr) * tr
    s_pad = rows_pad * 128

    x_flat = x.reshape(N, C, S)
    if s_pad != S:
        # Zero-pad the flattened spatial tail (attention is per-voxel, so the
        # padded voxels never influence valid outputs; they are sliced off below).
        x_flat = jnp.pad(x_flat, ((0, 0), (0, 0), (0, s_pad - S)))
    x4 = x_flat.reshape(N, C, rows_pad, 128)

    w2 = weights.astype(jnp.float32)       # (n_stages, C)  -> SMEM
    b1 = biases.astype(jnp.float32)        # (n_stages,)    -> SMEM

    # VMEM budget: in + out blocks, double-buffered, plus in-kernel temporaries.
    block_bytes = C * tr * 128 * x.dtype.itemsize
    vmem_limit = int(min(100 * 1024 * 1024,
                         max(32 * 1024 * 1024, 12 * block_bytes)))

    kernel = functools.partial(_dila_conv_block_kernel,
                               n_stages=n_stages, n_ch=C)

    out4 = pl.pallas_call(
        kernel,
        out_shape=jax.ShapeDtypeStruct((N, C, rows_pad, 128), x.dtype),
        grid_spec=pltpu.PrefetchScalarGridSpec(
            num_scalar_prefetch=0,
            grid=(N, rows_pad // tr),
            in_specs=[
                pl.BlockSpec(memory_space=pltpu.MemorySpace.SMEM),   # weights
                pl.BlockSpec(memory_space=pltpu.MemorySpace.SMEM),   # biases
                pl.BlockSpec((1, C, tr, 128), lambda n, t: (n, 0, t, 0)),
            ],
            out_specs=pl.BlockSpec((1, C, tr, 128), lambda n, t: (n, 0, t, 0)),
        ),
        input_output_aliases={2: 0},       # output reuses x4's HBM buffer
        compiler_params=pltpu.CompilerParams(
            dimension_semantics=("parallel", "parallel"),
            vmem_limit_bytes=vmem_limit),
    )(w2, b1, x4)

    out = out4.reshape(N, C, s_pad)[:, :, :S]
    return out.reshape(N, C, D, H, W)


def _reference(x, weights, biases):
    """Pure-JAX reference of the assumed PyTorch forward."""
    n_stages = weights.shape[0]
    y = x
    for s in range(n_stages):
        att = jnp.einsum("ncdhw,c->ndhw", y, weights[s])[:, None] + biases[s]
        att = jax.nn.sigmoid(att)
        y = jnp.maximum(y * att, 0.0)
    return y


if __name__ == "__main__":
    # DilaConvBlock(n_stages=2, n_filters_in=4, n_filters_out=4, normalization='none')
    n_stages, N, C, D, H, W = 2, 2, 4, 8, 8, 8

    key = jax.random.PRNGKey(0)
    kx, kw, kb = jax.random.split(key, 3)
    x = jax.random.normal(kx, (N, C, D, H, W), dtype=jnp.float32)
    # Per-stage Conv3d(C, 1, kernel_size=1) params: weight (1,C,1,1,1)->(C,), bias (1,)
    weights = jax.random.normal(kw, (n_stages, C), dtype=jnp.float32) * 0.5
    biases = jax.random.normal(kb, (n_stages,), dtype=jnp.float32) * 0.1

    run = jax.jit(dila_conv_block)
    out = jax.block_until_ready(run(x, weights, biases))
    ref = _reference(x, weights, biases)
    assert out.shape == x.shape
    assert jnp.allclose(out, ref, atol=1e-5, rtol=1e-5), "mismatch vs reference"

    # Second check: non-128-multiple spatial size exercises the padded-tail path.
    x2 = jax.random.normal(kx, (1, C, 7, 9, 5), dtype=jnp.float32)
    out2 = jax.block_until_ready(jax.jit(dila_conv_block)(x2, weights, biases))
    ref2 = _reference(x2, weights, biases)
    assert jnp.allclose(out2, ref2, atol=1e-5, rtol=1e-5), "mismatch (padded tail)"

    print("KERNEL_OK")
</pallas_src>

<mosaic_0001>
module attributes {stable_mosaic.version = 11 : i64} {
  func.func @_dila_conv_block_kernel(%arg0: i32, %arg1: i32, %arg2: memref<2x4xf32, #tpu.memory_space<smem>>, %arg3: memref<2xf32, #tpu.memory_space<smem>>, %arg4: memref<1x4x4x128xf32, #tpu.memory_space<vmem>>, %arg5: memref<1x4x4x128xf32, #tpu.memory_space<vmem>>) attributes {dimension_semantics = [#tpu.dimension_semantics<parallel>, #tpu.dimension_semantics<parallel>], iteration_bounds = array<i64: 2, 1>, scalar_prefetch = 0 : i64, scratch_operands = 0 : i64, tpu.core_type = #tpu.core_type<tc>, window_params = [{transform_indices = @transform_0, window_bounds = array<i64: 2, 4>}, {transform_indices = @transform_1, window_bounds = array<i64: 2>}, {transform_indices = @transform_2, window_bounds = array<i64: 1, 4, 4, 128>}, {transform_indices = @transform_3, window_bounds = array<i64: 1, 4, 4, 128>}]} {
    %c0 = arith.constant 0 : index
    %c0_0 = arith.constant 0 : index
    %c0_1 = arith.constant 0 : index
    %c0_2 = arith.constant 0 : index
    %0 = vector.load %arg4[%c0, %c0_0, %c0_1, %c0_2] : memref<1x4x4x128xf32, #tpu.memory_space<vmem>>, vector<1x1x4x128xf32>
    %1 = vector.shape_cast %0 : vector<1x1x4x128xf32> to vector<4x128xf32>
    %c0_3 = arith.constant 0 : index
    %c1 = arith.constant 1 : index
    %c0_4 = arith.constant 0 : index
    %c0_5 = arith.constant 0 : index
    %2 = vector.load %arg4[%c0_3, %c1, %c0_4, %c0_5] : memref<1x4x4x128xf32, #tpu.memory_space<vmem>>, vector<1x1x4x128xf32>
    %3 = vector.shape_cast %2 : vector<1x1x4x128xf32> to vector<4x128xf32>
    %c0_6 = arith.constant 0 : index
    %c2 = arith.constant 2 : index
    %c0_7 = arith.constant 0 : index
    %c0_8 = arith.constant 0 : index
    %4 = vector.load %arg4[%c0_6, %c2, %c0_7, %c0_8] : memref<1x4x4x128xf32, #tpu.memory_space<vmem>>, vector<1x1x4x128xf32>
    %5 = vector.shape_cast %4 : vector<1x1x4x128xf32> to vector<4x128xf32>
    %c0_9 = arith.constant 0 : index
    %c3 = arith.constant 3 : index
    %c0_10 = arith.constant 0 : index
    %c0_11 = arith.constant 0 : index
    %6 = vector.load %arg4[%c0_9, %c3, %c0_10, %c0_11] : memref<1x4x4x128xf32, #tpu.memory_space<vmem>>, vector<1x1x4x128xf32>
    %7 = vector.shape_cast %6 : vector<1x1x4x128xf32> to vector<4x128xf32>
    %c0_12 = arith.constant 0 : index
    %c0_13 = arith.constant 0 : index
    %8 = memref.load %arg2[%c0_12, %c0_13] : memref<2x4xf32, #tpu.memory_space<smem>>
    %9 = vector.broadcast %8 : f32 to vector<4x128xf32>
    %10 = arith.mulf %1, %9 : vector<4x128xf32>
    %c0_14 = arith.constant 0 : index
    %11 = memref.load %arg3[%c0_14] : memref<2xf32, #tpu.memory_space<smem>>
    %12 = vector.broadcast %11 : f32 to vector<4x128xf32>
    %13 = arith.addf %10, %12 : vector<4x128xf32>
    %c0_15 = arith.constant 0 : index
    %c1_16 = arith.constant 1 : index
    %14 = memref.load %arg2[%c0_15, %c1_16] : memref<2x4xf32, #tpu.memory_space<smem>>
    %15 = vector.broadcast %14 : f32 to vector<4x128xf32>
    %16 = arith.mulf %3, %15 : vector<4x128xf32>
    %17 = arith.addf %13, %16 : vector<4x128xf32>
    %c0_17 = arith.constant 0 : index
    %c2_18 = arith.constant 2 : index
    %18 = memref.load %arg2[%c0_17, %c2_18] : memref<2x4xf32, #tpu.memory_space<smem>>
    %19 = vector.broadcast %18 : f32 to vector<4x128xf32>
    %20 = arith.mulf %5, %19 : vector<4x128xf32>
    %21 = arith.addf %17, %20 : vector<4x128xf32>
    %c0_19 = arith.constant 0 : index
    %c3_20 = arith.constant 3 : index
    %22 = memref.load %arg2[%c0_19, %c3_20] : memref<2x4xf32, #tpu.memory_space<smem>>
    %23 = vector.broadcast %22 : f32 to vector<4x128xf32>
    %24 = arith.mulf %7, %23 : vector<4x128xf32>
    %25 = arith.addf %21, %24 : vector<4x128xf32>
    %cst = arith.constant 5.000000e-01 : f32
    %26 = vector.broadcast %cst : f32 to vector<4x128xf32>
    %27 = arith.mulf %26, %25 : vector<4x128xf32>
    %28 = math.tanh %27 : vector<4x128xf32>
    %cst_21 = arith.constant 1.000000e+00 : f32
    %29 = vector.broadcast %cst_21 : f32 to vector<4x128xf32>
    %30 = arith.addf %28, %29 : vector<4x128xf32>
    %cst_22 = arith.constant 5.000000e-01 : f32
    %31 = vector.broadcast %cst_22 : f32 to vector<4x128xf32>
    %32 = arith.mulf %31, %30 : vector<4x128xf32>
    %33 = arith.mulf %1, %32 : vector<4x128xf32>
    %cst_23 = arith.constant 0.000000e+00 : f32
    %34 = vector.broadcast %cst_23 : f32 to vector<4x128xf32>
    %35 = arith.maximumf %33, %34 : vector<4x128xf32>
    %36 = arith.mulf %3, %32 : vector<4x128xf32>
    %cst_24 = arith.constant 0.000000e+00 : f32
    %37 = vector.broadcast %cst_24 : f32 to vector<4x128xf32>
    %38 = arith.maximumf %36, %37 : vector<4x128xf32>
    %39 = arith.mulf %5, %32 : vector<4x128xf32>
    %cst_25 = arith.constant 0.000000e+00 : f32
    %40 = vector.broadcast %cst_25 : f32 to vector<4x128xf32>
    %41 = arith.maximumf %39, %40 : vector<4x128xf32>
    %42 = arith.mulf %7, %32 : vector<4x128xf32>
    %cst_26 = arith.constant 0.000000e+00 : f32
    %43 = vector.broadcast %cst_26 : f32 to vector<4x128xf32>
    %44 = arith.maximumf %42, %43 : vector<4x128xf32>
    %c1_27 = arith.constant 1 : index
    %c0_28 = arith.constant 0 : index
    %45 = memref.load %arg2[%c1_27, %c0_28] : memref<2x4xf32, #tpu.memory_space<smem>>
    %46 = vector.broadcast %45 : f32 to vector<4x128xf32>
    %47 = arith.mulf %35, %46 : vector<4x128xf32>
    %c1_29 = arith.constant 1 : index
    %48 = memref.load %arg3[%c1_29] : memref<2xf32, #tpu.memory_space<smem>>
    %49 = vector.broadcast %48 : f32 to vector<4x128xf32>
    %50 = arith.addf %47, %49 : vector<4x128xf32>
    %c1_30 = arith.constant 1 : index
    %c1_31 = arith.constant 1 : index
    %51 = memref.load %arg2[%c1_30, %c1_31] : memref<2x4xf32, #tpu.memory_space<smem>>
    %52 = vector.broadcast %51 : f32 to vector<4x128xf32>
    %53 = arith.mulf %38, %52 : vector<4x128xf32>
    %54 = arith.addf %50, %53 : vector<4x128xf32>
    %c1_32 = arith.constant 1 : index
    %c2_33 = arith.constant 2 : index
    %55 = memref.load %arg2[%c1_32, %c2_33] : memref<2x4xf32, #tpu.memory_space<smem>>
    %56 = vector.broadcast %55 : f32 to vector<4x128xf32>
    %57 = arith.mulf %41, %56 : vector<4x128xf32>
    %58 = arith.addf %54, %57 : vector<4x128xf32>
    %c1_34 = arith.constant 1 : index
    %c3_35 = arith.constant 3 : index
    %59 = memref.load %arg2[%c1_34, %c3_35] : memref<2x4xf32, #tpu.memory_space<smem>>
    %60 = vector.broadcast %59 : f32 to vector<4x128xf32>
    %61 = arith.mulf %44, %60 : vector<4x128xf32>
    %62 = arith.addf %58, %61 : vector<4x128xf32>
    %cst_36 = arith.constant 5.000000e-01 : f32
    %63 = vector.broadcast %cst_36 : f32 to vector<4x128xf32>
    %64 = arith.mulf %63, %62 : vector<4x128xf32>
    %65 = math.tanh %64 : vector<4x128xf32>
    %cst_37 = arith.constant 1.000000e+00 : f32
    %66 = vector.broadcast %cst_37 : f32 to vector<4x128xf32>
    %67 = arith.addf %65, %66 : vector<4x128xf32>
    %cst_38 = arith.constant 5.000000e-01 : f32
    %68 = vector.broadcast %cst_38 : f32 to vector<4x128xf32>
    %69 = arith.mulf %68, %67 : vector<4x128xf32>
    %70 = arith.mulf %35, %69 : vector<4x128xf32>
    %cst_39 = arith.constant 0.000000e+00 : f32
    %71 = vector.broadcast %cst_39 : f32 to vector<4x128xf32>
    %72 = arith.maximumf %70, %71 : vector<4x128xf32>
    %73 = arith.mulf %38, %69 : vector<4x128xf32>
    %cst_40 = arith.constant 0.000000e+00 : f32
    %74 = vector.broadcast %cst_40 : f32 to vector<4x128xf32>
    %75 = arith.maximumf %73, %74 : vector<4x128xf32>
    %76 = arith.mulf %41, %69 : vector<4x128xf32>
    %cst_41 = arith.constant 0.000000e+00 : f32
    %77 = vector.broadcast %cst_41 : f32 to vector<4x128xf32>
    %78 = arith.maximumf %76, %77 : vector<4x128xf32>
    %79 = arith.mulf %44, %69 : vector<4x128xf32>
    %cst_42 = arith.constant 0.000000e+00 : f32
    %80 = vector.broadcast %cst_42 : f32 to vector<4x128xf32>
    %81 = arith.maximumf %79, %80 : vector<4x128xf32>
    %c0_43 = arith.constant 0 : index
    %c0_44 = arith.constant 0 : index
    %c0_45 = arith.constant 0 : index
    %c0_46 = arith.constant 0 : index
    %82 = vector.load %arg5[%c0_43, %c0_44, %c0_45, %c0_46] : memref<1x4x4x128xf32, #tpu.memory_space<vmem>>, vector<1x1x4x128xf32>
    %83 = vector.shape_cast %82 : vector<1x1x4x128xf32> to vector<4x128xf32>
    %84 = vector.shape_cast %72 : vector<4x128xf32> to vector<1x1x4x128xf32>
    tpu.vector_store %arg5[%c0_43, %c0_44, %c0_45, %c0_46], %84 {strides = array<i32>} : memref<1x4x4x128xf32, #tpu.memory_space<vmem>>, vector<1x1x4x128xf32>,
    %c0_47 = arith.constant 0 : index
    %c1_48 = arith.constant 1 : index
    %c0_49 = arith.constant 0 : index
    %c0_50 = arith.constant 0 : index
    %85 = vector.load %arg5[%c0_47, %c1_48, %c0_49, %c0_50] : memref<1x4x4x128xf32, #tpu.memory_space<vmem>>, vector<1x1x4x128xf32>
    %86 = vector.shape_cast %85 : vector<1x1x4x128xf32> to vector<4x128xf32>
    %87 = vector.shape_cast %75 : vector<4x128xf32> to vector<1x1x4x128xf32>
    tpu.vector_store %arg5[%c0_47, %c1_48, %c0_49, %c0_50], %87 {strides = array<i32>} : memref<1x4x4x128xf32, #tpu.memory_space<vmem>>, vector<1x1x4x128xf32>,
    %c0_51 = arith.constant 0 : index
    %c2_52 = arith.constant 2 : index
    %c0_53 = arith.constant 0 : index
    %c0_54 = arith.constant 0 : index
    %88 = vector.load %arg5[%c0_51, %c2_52, %c0_53, %c0_54] : memref<1x4x4x128xf32, #tpu.memory_space<vmem>>, vector<1x1x4x128xf32>
    %89 = vector.shape_cast %88 : vector<1x1x4x128xf32> to vector<4x128xf32>
    %90 = vector.shape_cast %78 : vector<4x128xf32> to vector<1x1x4x128xf32>
    tpu.vector_store %arg5[%c0_51, %c2_52, %c0_53, %c0_54], %90 {strides = array<i32>} : memref<1x4x4x128xf32, #tpu.memory_space<vmem>>, vector<1x1x4x128xf32>,
    %c0_55 = arith.constant 0 : index
    %c3_56 = arith.constant 3 : index
    %c0_57 = arith.constant 0 : index
    %c0_58 = arith.constant 0 : index
    %91 = vector.load %arg5[%c0_55, %c3_56, %c0_57, %c0_58] : memref<1x4x4x128xf32, #tpu.memory_space<vmem>>, vector<1x1x4x128xf32>
    %92 = vector.shape_cast %91 : vector<1x1x4x128xf32> to vector<4x128xf32>
    %93 = vector.shape_cast %81 : vector<4x128xf32> to vector<1x1x4x128xf32>
    tpu.vector_store %arg5[%c0_55, %c3_56, %c0_57, %c0_58], %93 {strides = array<i32>} : memref<1x4x4x128xf32, #tpu.memory_space<vmem>>, vector<1x1x4x128xf32>,
    return
  }
  func.func @transform_0(%arg0: i32, %arg1: i32) -> (i32, i32) {
    %c0_i32 = arith.constant 0 : i32
    %c0_i32_0 = arith.constant 0 : i32
    %c0_i32_1 = arith.constant 0 : i32
    return %c0_i32, %c0_i32_0 : i32, i32
  }
  func.func @transform_1(%arg0: i32, %arg1: i32) -> i32 {
    %c0_i32 = arith.constant 0 : i32
    %c0_i32_0 = arith.constant 0 : i32
    return %c0_i32 : i32
  }
  func.func @transform_2(%arg0: i32, %arg1: i32) -> (i32, i32, i32, i32) {
    %c0_i32 = arith.constant 0 : i32
    %c0_i32_0 = arith.constant 0 : i32
    %c0_i32_1 = arith.constant 0 : i32
    return %arg0, %c0_i32, %arg1, %c0_i32_0 : i32, i32, i32, i32
  }
  func.func @transform_3(%arg0: i32, %arg1: i32) -> (i32, i32, i32, i32) {
    %c0_i32 = arith.constant 0 : i32
    %c0_i32_0 = arith.constant 0 : i32
    %c0_i32_1 = arith.constant 0 : i32
    return %arg0, %c0_i32, %arg1, %c0_i32_0 : i32, i32, i32, i32
  }
}

</mosaic_0001>

<llo_original>
// kernel: dila_conv_block.1
$region0: #{dila_conv_block.1}
  #allocation0 [shape = 'u32[]', space=smem, size = 0x4, offset = 0x4, fixed_abs, tag = 'smem constant byte address 0x4 - core index']
  #allocation1 [shape = 'u32[144,128]{1,0:T(1,128)}', space=vmem, size = 0x12000, scoped, tag = 'internal scratch']
  %s0 = inlined_call_operand.vmem [shape: f32[2,4], index: 0, kind: input, shape index: {}]
  %s1 = inlined_call_operand.vmem [shape: f32[2], index: 1, kind: input, shape index: {}]
  %s2 = inlined_call_operand.vmem [shape: f32[2,4,4,128], index: 2, kind: input, shape index: {}, may-alias: {2,3}]
  %s3 = inlined_call_operand.vmem [shape: f32[2,4,4,128], index: 3, kind: output, shape index: {}, may-alias: {2,3}]
  %s4 = sld [smem:[#allocation0]]
  $region53: #{dila_conv_block.1} parent=0
    _
  %s6 = ssub.s32 1, %s4
  %s7 = scalar_select 0, %s6, %s4
  $region1: #{dila_conv_block.1} parent=0
    #allocation2 [shape = 'u8[1024]{0}', space=smem, size = 0x400, scoped, tag = 'input window, operand 0, single buffered']
    #allocation3 [shape = 's32[2]{0}', space=sflag, size = 0x8, scoped, tag = 'scoped memory for dila_conv_block.1']
    #allocation4 [shape = 'u8[512]{0}', space=smem, size = 0x200, scoped, tag = 'input window, operand 1, single buffered']
    #allocation5 [shape = 's32[1]{0}', space=sflag, size = 0x4, scoped, tag = 'scoped memory for dila_conv_block.1']
    %8 = vsyncpa [#allocation3], 0
    %9 = vsyncpa [#allocation5], 0
    loop: start=0, step=1, limit=4
    $region2: #{dila_conv_block.1} parent=1 // loop_pre_header
      _
    $region3: #{dila_conv_block.1} parent=1 // loop_header
      %s11 = sphi 0, %s15
      %p12 = scmp.ge.s32.totalorder %s11, 4
      %s18 = sphi 0, %s30
      %s19 = sphi 0, %s26
      %s20 = sphi 0, %s18
      %s21 = sphi 0, %s19
      %s22 = sphi 0, %s20
      %s23 = sphi 0, %s21
      %s31 = sphi 0, %s31
      %s33 = sphi 0, %s31
      %s34 = sphi 0, %s33
      %s48 = sphi 0, %s34
      %s52 = sphi 0, %s52
      %s54 = sphi 0, %s52
      %s55 = sphi 0, %s54
      %s69 = sphi 0, %s55
      %s77 = sphi 0, %s79
      %s80 = sphi 0, %s77
      %s81 = sphi 0, %s80
      %s97 = sphi 0, %s81
      %s105 = sphi 0, %s107
      %s108 = sphi 0, %s105
      %s109 = sphi 0, %s108
      %s125 = sphi 0, %s109
    $region4: #{dila_conv_block.1} parent=1 // loop_header_branch
      %14 = sbr.rel (%p12) target = $region8
    $region5: #{dila_conv_block.1} parent=1 // loop_body
      %s16 = ssub.s32 %s11, 1
      %s17 = ssub.s32 %s11, 2
      %s24 = sadd.s32 1, %s19
      %p25 = scmp.ge.s32.totalorder %s24, 1
      %s26 = scalar_select %p25, 0, %s24
      %s27 = sadd.s32 1, %s18
      %s28 = scalar_select %p25, %s27, %s18
      %p29 = scmp.ge.s32.totalorder %s28, 2
      %s30 = scalar_select %p29, 0, %s28
      %s32 = sadd.s32 %s31, 1
      %p35 = scmp.eq.s32.totalorder %s11, 1
      %p36 = scmp.ne.s32.totalorder %s31, %s33
      %p37 = scmp.eq.s32.totalorder %s11, 0
      %p38 = por %p36, %p37
      %p39 = scmp.ne.s32.totalorder %s31, %s33
      %p40 = scmp.eq.s32.totalorder %s16, 1
      %p41 = por %p39, %p40
      %p42 = scmp.ne.s32.totalorder %s33, %s34
      %p43 = scmp.eq.s32.totalorder %s16, 0
      %p44 = por %p42, %p43
      %p45 = scmp.ne.s32.totalorder %s33, %s34
      %p46 = scmp.eq.s32.totalorder %s17, 1
      %p47 = por %p45, %p46
      %p49 = scmp.ne.s32.totalorder %s34, %s48
      %p50 = scmp.eq.s32.totalorder %s17, 0
      %p51 = por %p49, %p50
      %s53 = sadd.s32 %s52, 1
      %p56 = scmp.eq.s32.totalorder %s11, 1
      %p57 = scmp.ne.s32.totalorder %s52, %s54
      %p58 = scmp.eq.s32.totalorder %s11, 0
      %p59 = por %p57, %p58
      %p60 = scmp.ne.s32.totalorder %s52, %s54
      %p61 = scmp.eq.s32.totalorder %s16, 1
      %p62 = por %p60, %p61
      %p63 = scmp.ne.s32.totalorder %s54, %s55
      %p64 = scmp.eq.s32.totalorder %s16, 0
      %p65 = por %p63, %p64
      %p66 = scmp.ne.s32.totalorder %s54, %s55
      %p67 = scmp.eq.s32.totalorder %s17, 1
      %p68 = por %p66, %p67
      %p70 = scmp.ne.s32.totalorder %s55, %s69
      %p71 = scmp.eq.s32.totalorder %s17, 0
      %p72 = por %p70, %p71
      %s73 = ssub.s32 %s18, %s30
      %s74 = ssub.s32 %s19, %s26
      %s75 = sor.u32 %s73, %s74
      %p76 = scmp.eq.s32.totalorder %s75, 0
      %s78 = sadd.s32 %s77, 1
      %s79 = scalar_select %p76, %s77, %s78
      %p82 = pneg %p76
      %p83 = scmp.eq.s32.totalorder %s11, 1
      %p84 = por %p82, %p83
      %p85 = scmp.ne.s32.totalorder %s77, %s80
      %p86 = scmp.eq.s32.totalorder %s11, 0
      %p87 = por %p85, %p86
      %p88 = scmp.ne.s32.totalorder %s77, %s80
      %p89 = scmp.eq.s32.totalorder %s16, 1
      %p90 = por %p88, %p89
      %p91 = scmp.ne.s32.totalorder %s80, %s81
      %p92 = scmp.eq.s32.totalorder %s16, 0
      %p93 = por %p91, %p92
      %p94 = scmp.ne.s32.totalorder %s80, %s81
      %p95 = scmp.eq.s32.totalorder %s17, 1
      %p96 = por %p94, %p95
      %p98 = scmp.ne.s32.totalorder %s81, %s97
      %p99 = scmp.eq.s32.totalorder %s17, 0
      %p100 = por %p98, %p99
      %s101 = ssub.s32 %s18, %s30
      %s102 = ssub.s32 %s19, %s26
      %s103 = sor.u32 %s101, %s102
      %p104 = scmp.eq.s32.totalorder %s103, 0
      %s106 = sadd.s32 %s105, 1
      %s107 = scalar_select %p104, %s105, %s106
      %p110 = pneg %p104
      %p111 = scmp.eq.s32.totalorder %s11, 1
      %p112 = por %p110, %p111
      %p113 = scmp.ne.s32.totalorder %s105, %s108
      %p114 = scmp.eq.s32.totalorder %s11, 0
      %p115 = por %p113, %p114
      %p116 = scmp.ne.s32.totalorder %s105, %s108
      %p117 = scmp.eq.s32.totalorder %s16, 1
      %p118 = por %p116, %p117
      %p119 = scmp.ne.s32.totalorder %s108, %s109
      %p120 = scmp.eq.s32.totalorder %s16, 0
      %p121 = por %p119, %p120
      %p122 = scmp.ne.s32.totalorder %s108, %s109
      %p123 = scmp.eq.s32.totalorder %s17, 1
      %p124 = por %p122, %p123
      %p126 = scmp.ne.s32.totalorder %s109, %s125
      %p127 = scmp.eq.s32.totalorder %s17, 0
      %p128 = por %p126, %p127
      %p129 = scmp.le.s32.totalorder 1, %s11
      %p130 = scmp.lt.s32.totalorder %s11, 3
      %p131 = pnand %p129, %p130
      %p132 = pneg %p131
      // Predicated region
      $region9: #{dila_conv_block.1} parent=5 // pred_check
        _
      $region10: #{dila_conv_block.1} parent=5 // pred_check_branch
        %134 = sbr.rel (%p131) target = $region12
      $region11: #{dila_conv_block.1} parent=5 // pred_region
        %s135 = ssub.s32 %s11, 1
        // Predicated region
        $region13: #{dila_conv_block.1} parent=11 // pred_check
          %p136 = pneg %p44
        $region14: #{dila_conv_block.1} parent=11 // pred_check_branch
          %138 = sbr.rel (%p136) target = $region16
        $region15: #{dila_conv_block.1} parent=11 // pred_region
          %s140 = ssub.s32 32, 32
          %141 = vsyncadd [#allocation3], %s140
          %s143 = sshll.u32 %s0, 4
          %s144 = int_to_ptr.vmem [resolvable:$true] %s143
          %146 = dma.vmem_to_smem %s144, 32, [#allocation2], [#allocation3]
        $region16: #{dila_conv_block.1} parent=11 // pred_fallthru
          _
        // Predicated region
        $region17: #{dila_conv_block.1} parent=11 // pred_check
          %p147 = pneg %p65
        $region18: #{dila_conv_block.1} parent=11 // pred_check_branch
          %149 = sbr.rel (%p147) target = $region20
        $region19: #{dila_conv_block.1} parent=11 // pred_region
          %s151 = ssub.s32 16, 16
          %152 = vsyncadd [#allocation5], %s151
          %s154 = sshll.u32 %s1, 4
          %s155 = int_to_ptr.vmem [resolvable:$true] %s154
          %157 = dma.vmem_to_smem %s155, 16, [#allocation4], [#allocation5]
        $region20: #{dila_conv_block.1} parent=11 // pred_fallthru
          _
      $region12: #{dila_conv_block.1} parent=5 // pred_fallthru
        _
      %p158 = scmp.lt.s32.totalorder %s11, 2
      // Predicated region
      $region21: #{dila_conv_block.1} parent=5 // pred_check
        %p159 = pneg %p158
      $region22: #{dila_conv_block.1} parent=5 // pred_check_branch
        %161 = sbr.rel (%p159) target = $region24
      $region23: #{dila_conv_block.1} parent=5 // pred_region
        // Predicated region
        $region25: #{dila_conv_block.1} parent=23 // pred_check
          %p162 = pneg %p87
        $region26: #{dila_conv_block.1} parent=23 // pred_check_branch
          %164 = sbr.rel (%p162) target = $region28
        $region27: #{dila_conv_block.1} parent=23 // pred_region
          %p165 = scmp.lt.s32.totalorder %s18, 1
          %s166 = scalar_select %p165, %s18, 1
          %p167 = scmp.lt.s32.totalorder %s19, 0
          %s168 = scalar_select %p167, %s19, 0
          %s169 = smul.addr %s166, 4
          %s170 = sadd.s32 %s168, %s169
          %s171 = smul.addr %s170, 4
          %s172 = scalar_lea.vmem %s2, %s171
        $region28: #{dila_conv_block.1} parent=23 // pred_fallthru
          _
      $region24: #{dila_conv_block.1} parent=5 // pred_fallthru
        _
      %p173 = scmp.le.s32.totalorder 1, %s11
      %p174 = scmp.lt.s32.totalorder %s11, 3
      %p175 = pnand %p173, %p174
      %p176 = pneg %p175
      // Predicated region
      $region29: #{dila_conv_block.1} parent=5 // pred_check
        _
      $region30: #{dila_conv_block.1} parent=5 // pred_check_branch
        %178 = sbr.rel (%p175) target = $region32
      $region31: #{dila_conv_block.1} parent=5 // pred_region
        %s179 = ssub.s32 %s11, 1
        // Predicated region
        $region33: #{dila_conv_block.1} parent=31 // pred_check
          %p180 = pneg %p44
        $region34: #{dila_conv_block.1} parent=31 // pred_check_branch
          %182 = sbr.rel (%p180) target = $region36
        $region35: #{dila_conv_block.1} parent=31 // pred_region
          %183 = dma.done [#allocation3], 32
        $region36: #{dila_conv_block.1} parent=31 // pred_fallthru
          _
        // Predicated region
        $region37: #{dila_conv_block.1} parent=31 // pred_check
          %p184 = pneg %p65
        $region38: #{dila_conv_block.1} parent=31 // pred_check_branch
          %186 = sbr.rel (%p184) target = $region40
        $region39: #{dila_conv_block.1} parent=31 // pred_region
          %187 = dma.done [#allocation5], 16
        $region40: #{dila_conv_block.1} parent=31 // pred_fallthru
          _
        %188 = sfence
        %p189 = pneg %p44
        %p190 = pneg %p41
        %p191 = pneg %p65
        %p192 = pneg %p62
        %p193 = scmp.lt.s32.totalorder %s20, 1
        %s194 = scalar_select %p193, %s20, 1
        %p195 = scmp.lt.s32.totalorder %s21, 0
        %s196 = scalar_select %p195, %s21, 0
        %s197 = smul.addr %s194, 4
        %s198 = sadd.s32 %s196, %s197
        %s199 = smul.addr %s198, 4
        %s200 = scalar_lea.vmem %s2, %s199
        %p201 = pneg %p93
        %p202 = pneg %p90
        %p203 = pneg %p121
        %p204 = pneg %p118
        %p205 = scmp.lt.s32.totalorder %s20, 1
        %s206 = scalar_select %p205, %s20, 1
        %p207 = scmp.lt.s32.totalorder %s21, 0
        %s208 = scalar_select %p207, %s21, 0
        %s209 = smul.addr %s206, 4
        %s210 = sadd.s32 %s208, %s209
        %s211 = smul.addr %s210, 4
        %s212 = scalar_lea.vmem %s3, %s211
        %p213 = scmp.lt.s32.totalorder %s20, 1
        %s214 = scalar_select %p213, %s20, 1
        %p215 = scmp.lt.s32.totalorder %s21, 0
        %s216 = scalar_select %p215, %s21, 0
        %s217 = smul.addr %s214, 4
        %s218 = sadd.s32 %s216, %s217
        %s219 = smul.addr %s218, 4
        %s220 = scalar_lea.vmem %s2, %s219
        %p221 = scmp.lt.s32.totalorder %s20, 1
        %s222 = scalar_select %p221, %s20, 1
        %p223 = scmp.lt.s32.totalorder %s21, 0
        %s224 = scalar_select %p223, %s21, 0
        %s225 = smul.addr %s222, 4
        %s226 = sadd.s32 %s224, %s225
        %s227 = smul.addr %s226, 4
        %s228 = scalar_lea.vmem %s3, %s227
        %v229 = vld [vmem:[%s220] sm:$0xf]
        %s230 = scalar_lea.vmem %s220, 4
        %v231 = vld [vmem:[%s230] sm:$0xf]
        %s232 = scalar_lea.vmem %s220, 8
        %v233 = vld [vmem:[%s232] sm:$0xf]
        %s234 = scalar_lea.vmem %s220, 12
        %v235 = vld [vmem:[%s234] sm:$0xf]
        %s236 = sld [smem:[#allocation2]]
        %v237 = vstv %s236
        %v238 = vmul.f32 %v229, %v237
        %s239 = sld [smem:[#allocation4]]
        %v240 = vstv %s239
        %v241 = vadd.f32 %v238, %v240
        %s242 = sld [smem:[#allocation2 + $0x1]]
        %v243 = vstv %s242
        %v244 = vmul.f32 %v231, %v243
        %v245 = vadd.f32 %v241, %v244
        %s246 = sld [smem:[#allocation2 + $0x2]]
        %v247 = vstv %s246
        %v248 = vmul.f32 %v233, %v247
        %v249 = vadd.f32 %v245, %v248
        %s250 = sld [smem:[#allocation2 + $0x3]]
        %v251 = vstv %s250
        %v252 = vmul.f32 %v235, %v251
        %v253 = vadd.f32 %v249, %v252
        %v254 = vmul.f32 %v253, 0.5
        %v255 = vtanh.pop %v254
        %v256 = vadd.f32 %v255, 1.0
        %v257 = vmul.f32 %v256, 0.5
        %v258 = vmul.f32 %v229, %v257
        %v259 = vmax.f32 %v258, 0.0
        %v260 = vmul.f32 %v231, %v257
        %v261 = vmax.f32 %v260, 0.0
        %v262 = vmul.f32 %v233, %v257
        %v263 = vmax.f32 %v262, 0.0
        %v264 = vmul.f32 %v235, %v257
        %v265 = vmax.f32 %v264, 0.0
        %s266 = sld [smem:[#allocation2 + $0x80]]
        %v267 = vstv %s266
        %v268 = vmul.f32 %v259, %v267
        %s269 = sld [smem:[#allocation4 + $0x1]]
        %v270 = vstv %s269
        %v271 = vadd.f32 %v268, %v270
        %s272 = sld [smem:[#allocation2 + $0x81]]
        %v273 = vstv %s272
        %v274 = vmul.f32 %v261, %v273
        %v275 = vadd.f32 %v271, %v274
        %s276 = sld [smem:[#allocation2 + $0x82]]
        %v277 = vstv %s276
        %v278 = vmul.f32 %v263, %v277
        %v279 = vadd.f32 %v275, %v278
        %s280 = sld [smem:[#allocation2 + $0x83]]
        %v281 = vstv %s280
        %v282 = vmul.f32 %v265, %v281
        %v283 = vadd.f32 %v279, %v282
        %v284 = vmul.f32 %v283, 0.5
        %v285 = vtanh.pop %v284
        %v286 = vadd.f32 %v285, 1.0
        %v287 = vmul.f32 %v286, 0.5
        %v288 = vmul.f32 %v259, %v287
        %v289 = vmax.f32 %v288, 0.0
        %v290 = vmul.f32 %v261, %v287
        %v291 = vmax.f32 %v290, 0.0
        %v292 = vmul.f32 %v263, %v287
        %v293 = vmax.f32 %v292, 0.0
        %v294 = vmul.f32 %v265, %v287
        %v295 = vmax.f32 %v294, 0.0
        %296 = vst [vmem:[%s228] sm:$0xf] %v289
        %s297 = scalar_lea.vmem %s228, 4
        %298 = vst [vmem:[%s297] sm:$0xf] %v291
        %s299 = scalar_lea.vmem %s228, 8
        %300 = vst [vmem:[%s299] sm:$0xf] %v293
        %s301 = scalar_lea.vmem %s228, 12
        %302 = vst [vmem:[%s301] sm:$0xf] %v295
        %p303 = scmp.lt.s32.totalorder %s20, 1
        %s304 = scalar_select %p303, %s20, 1
        %p305 = scmp.lt.s32.totalorder %s21, 0
        %s306 = scalar_select %p305, %s21, 0
        %s307 = smul.addr %s304, 4
        %s308 = sadd.s32 %s306, %s307
        %s309 = smul.addr %s308, 4
        %s310 = scalar_lea.vmem %s3, %s309
        // Predicated region
        $region41: #{dila_conv_block.1} parent=31 // pred_check
          %p311 = pneg %p118
        $region42: #{dila_conv_block.1} parent=31 // pred_check_branch
          %313 = sbr.rel (%p311) target = $region44
        $region43: #{dila_conv_block.1} parent=31 // pred_region
          _
        $region44: #{dila_conv_block.1} parent=31 // pred_fallthru
          _
      $region32: #{dila_conv_block.1} parent=5 // pred_fallthru
        _
      %p314 = scmp.le.s32.totalorder 2, %s11
      // Predicated region
      $region45: #{dila_conv_block.1} parent=5 // pred_check
        %p315 = pneg %p314
      $region46: #{dila_conv_block.1} parent=5 // pred_check_branch
        %317 = sbr.rel (%p315) target = $region48
      $region47: #{dila_conv_block.1} parent=5 // pred_region
        %s318 = ssub.s32 %s11, 2
        // Predicated region
        $region49: #{dila_conv_block.1} parent=47 // pred_check
          %p319 = pneg %p124
        $region50: #{dila_conv_block.1} parent=47 // pred_check_branch
          %321 = sbr.rel (%p319) target = $region52
        $region51: #{dila_conv_block.1} parent=47 // pred_region
          %p322 = scmp.lt.s32.totalorder %s22, 1
          %s323 = scalar_select %p322, %s22, 1
          %p324 = scmp.lt.s32.totalorder %s23, 0
          %s325 = scalar_select %p324, %s23, 0
          %s326 = smul.addr %s323, 4
          %s327 = sadd.s32 %s325, %s326
          %s328 = smul.addr %s327, 4
          %s329 = scalar_lea.vmem %s3, %s328
        $region52: #{dila_conv_block.1} parent=47 // pred_fallthru
          _
      $region48: #{dila_conv_block.1} parent=5 // pred_fallthru
        _
    $region6: #{dila_conv_block.1} parent=1 // loop_footer
      %s15 = sadd.s32 1, %s11
    $region7: #{dila_conv_block.1} parent=1 // loop_footer_branch
      %10 = sbr.rel target = $region3
    $region8: #{dila_conv_block.1} parent=1 // loop_exit
      _
    %330 = vsyncpa [#allocation3], 1
    %s331 = scalar_lea.sflag [#allocation3], 1
    %332 = vsyncpa %s331, 1
    %333 = vsyncpa [#allocation5], 1

</llo_original>
